<compile_context>
chip_gen: v7x
topology: tpu7x:2x2x1
jax: 0.10.0
libtpu: 0.0.40
codegen_flags: <defaults>
</compile_context>

<pallas_src>
import functools

import jax
import jax.numpy as jnp
from jax.experimental import pallas as pl
from jax.experimental.pallas import tpu as pltpu


def _render_kernel(par_ref, out_ref, *, n_pts, min_depth, max_depth, H, W):
    """One grid step == one (batch, ray-tile) pair.

    par_ref: (B*12,) f32 in SMEM: per camera [origin(3), rotation row-major(9)]
    out_ref: (1, 4, Rt) f32 in VMEM: rows 0..2 = RGB, row 3 = opacity
    """
    b = pl.program_id(0)
    r = pl.program_id(1)
    rt = out_ref.shape[2]

    base = b * 12
    ox = par_ref[base + 0]
    oy = par_ref[base + 1]
    oz = par_ref[base + 2]
    r00 = par_ref[base + 3]; r01 = par_ref[base + 4]; r02 = par_ref[base + 5]
    r10 = par_ref[base + 6]; r11 = par_ref[base + 7]; r12 = par_ref[base + 8]
    r20 = par_ref[base + 9]; r21 = par_ref[base + 10]; r22 = par_ref[base + 11]

    # ---- fused NDC-grid raysampler: ray directions regenerated in-kernel ----
    # ~20 narrow (1,Rt) VALU rows + one EUP rsqrt per tile; removes the
    # (B,3,R) HBM stream and the separate direction-building XLA launch.
    lane = jax.lax.broadcasted_iota(jnp.int32, (1, rt), 1)
    ridx = (lane + r * rt).astype(jnp.float32)             # global ray index
    row = jnp.floor((ridx + 0.5) * (1.0 / W))              # i // W (exact)
    col = ridx - row * W                                    # i %  W
    gx = col * (2.0 / max(W - 1, 1)) - 1.0
    gy = row * (2.0 / max(H - 1, 1)) - 1.0
    inv_c = jax.lax.rsqrt(gx * gx + gy * gy + 1.0)
    cx = gx * inv_c
    cy = gy * inv_c
    cz = inv_c
    dx = r00 * cx + r01 * cy + r02 * cz                     # (1, Rt) world dirs
    dy = r10 * cx + r11 * cy + r12 * cz
    dz = r20 * cx + r21 * cy + r22 * cz

    # Depth samples: pure linspace regenerated from static constants (no HBM).
    # The int32 iota is kept because it doubles as the sublane index for the
    # scan masks below (one extra int->f32 convert, nothing else).
    step = (max_depth - min_depth) / max(n_pts - 1, 1)
    p_i = jax.lax.broadcasted_iota(jnp.int32, (n_pts, rt), 0)
    lens = min_depth + step * p_i.astype(jnp.float32)       # (P, Rt)

    # ray_bundle_to_ray_points, full (P, Rt) width (sublane broadcast of dirs).
    px = ox + dx * lens
    py = oy + dy * lens
    pz = oz + dz * lens

    # volumetric_function (RGB unit sphere).  Fused norm: one rsqrt feeds both
    # the density and the (folded) feature path.
    sq = px * px + py * py + pz * pz
    inv_norm = jax.lax.rsqrt(jnp.maximum(sq, 1e-24))        # 1 / max(|p|,1e-12)
    dens = jax.nn.sigmoid(-100.0 * (sq * inv_norm))         # sigmoid(-100*|p|)

    # EmissionAbsorption raymarcher.
    #   absorb[p] = prod_{q<p} ((1+eps) - dens[q])   (exclusive cumprod over P)
    # computed as a log2(P) Hillis-Steele scan along sublanes with pltpu.roll
    # (XLU slot) — replaces the old O(P^2) masked compare/select build (VALU).
    eps = 1e-10
    t = (1.0 + eps) - dens
    if n_pts == 1:
        absorb = jnp.ones_like(dens)
    else:
        s = jnp.where(p_i < 1, 1.0, pltpu.roll(t, 1, axis=0))   # s[p] = t[p-1]
        k = 1
        while k < n_pts:                                        # static 1,2,4,...
            s = s * jnp.where(p_i < k, 1.0, pltpu.roll(s, k, axis=0))
            k *= 2
        absorb = s

    # Weights + sublane reductions, with the feature affine (x*0.5 + 0.5)
    # folded past the reduction: rgb = 0.5*sum(w*inv_norm*p) + 0.5*sum(w).
    w = dens * absorb                                       # (P, Rt)
    wi = w * inv_norm
    sr = jnp.sum(wi * px, axis=0, keepdims=True)            # (1, Rt) XLU reduce
    sg = jnp.sum(wi * py, axis=0, keepdims=True)
    sb = jnp.sum(wi * pz, axis=0, keepdims=True)
    sw = jnp.sum(w, axis=0, keepdims=True)

    # Four plain row stores: the store slot is <5% utilized even on v5e, so we
    # spend zero VALU/XLU work on packing.
    half_sw = 0.5 * sw
    out_ref[0, 0:1, :] = 0.5 * sr + half_sw
    out_ref[0, 1:2, :] = 0.5 * sg + half_sw
    out_ref[0, 2:3, :] = 0.5 * sb + half_sw
    out_ref[0, 3:4, :] = sw


def _pick_ray_tile(B, R_pad, target=1024):
    """Largest 128-multiple divisor of R_pad that is <= target.

    target=1024 amortizes the ~0.35us per-grid-step overhead while keeping the
    ~8 live (P,Rt) f32 temporaries near the 64-vreg file (vreg pressure — not
    VMEM capacity — is the real constraint).  If the grid would collapse to a
    single step (B==1 and one ray tile), halve the tile so v7x's two
    TensorCores both get work.
    """
    def best_div(cap):
        tile = (min(cap, R_pad) // 128) * 128
        while tile >= 128 and R_pad % tile:
            tile -= 128
        return max(tile, 128)

    rt = best_div(target)
    if B * (R_pad // rt) < 2 and R_pad >= 256:
        rt = best_div(R_pad // 2)
    return rt


def _pallas_render(cam_params, B, R_pad, H, W, n_pts, min_depth, max_depth):
    """cam_params: (B*12,) f32 (SMEM). Returns rendered (B, 4, R_pad) f32."""
    rt = _pick_ray_tile(B, R_pad)
    n_r = R_pad // rt
    kernel = functools.partial(
        _render_kernel, n_pts=n_pts, min_depth=float(min_depth),
        max_depth=float(max_depth), H=H, W=W)
    return pl.pallas_call(
        kernel,
        out_shape=jax.ShapeDtypeStruct((B, 4, R_pad), jnp.float32),
        grid_spec=pltpu.PrefetchScalarGridSpec(
            num_scalar_prefetch=0,
            grid=(B, n_r),
            in_specs=[
                # All per-camera scalars (origins + rotations) live in SMEM;
                # the kernel has no per-ray HBM input at all.
                pl.BlockSpec(memory_space=pltpu.MemorySpace.SMEM),
            ],
            out_specs=pl.BlockSpec((1, 4, rt), lambda b, r: (b, 0, r)),
        ),
        compiler_params=pltpu.CompilerParams(
            dimension_semantics=("parallel", "parallel")),
    )(cam_params)


# ---------------------------------------------------------------------------
# Glue: raysampler constants (for the returned RayBundle) + renderer wrapper
# ---------------------------------------------------------------------------
def _grid_raysampler_constants(H, W):
    # Same formulas as the in-kernel generator so the returned ray_bundle and
    # the kernel agree bit-for-bit up to rounding.
    ys = jnp.arange(H, dtype=jnp.float32) * (2.0 / max(H - 1, 1)) - 1.0
    xs = jnp.arange(W, dtype=jnp.float32) * (2.0 / max(W - 1, 1)) - 1.0
    gy, gx = jnp.meshgrid(ys, xs, indexing="ij")
    xys = jnp.stack([gx, gy], axis=-1)                      # (H, W, 2)
    inv_n = jax.lax.rsqrt(gx * gx + gy * gy + 1.0)
    dirs_cam = jnp.stack([gx * inv_n, gy * inv_n, inv_n], axis=-1)  # (H, W, 3)
    return xys, dirs_cam


def custom_implicit_renderer_forward(cam_centers, cam_rotations, *,
                                     H=16, W=16, n_pts_per_ray=8,
                                     min_depth=0.5, max_depth=2.5):
    """Mirrors CustomImplicitRenderer.forward (reg=None branch)."""
    B = cam_centers.shape[0]
    R = H * W
    R_pad = ((R + 127) // 128) * 128          # lane-dense tiles, unmasked stores

    cam_params = jnp.concatenate(
        [cam_centers.astype(jnp.float32).reshape(B, 3),
         cam_rotations.astype(jnp.float32).reshape(B, 9)], axis=1).reshape(-1)

    img_k = _pallas_render(cam_params, B, R_pad, H, W,
                           n_pts_per_ray, min_depth, max_depth)    # (B,4,R_pad)
    images = img_k[:, :, :R].reshape(B, 4, H, W).transpose(0, 2, 3, 1)

    # RayBundle in PyTorch-style layout, returned to the caller (built in
    # plain JAX; never consumed by the kernel, so off its critical path).
    xys, dirs_cam = _grid_raysampler_constants(H, W)
    directions = jnp.einsum("bij,hwj->bhwi",
                            cam_rotations.astype(jnp.float32), dirs_cam)
    origins = jnp.broadcast_to(cam_centers[:, None, None, :], (B, H, W, 3))
    step = (max_depth - min_depth) / max(n_pts_per_ray - 1, 1)
    depths = min_depth + step * jnp.arange(n_pts_per_ray, dtype=jnp.float32)
    lengths = jnp.broadcast_to(depths, (B, H, W, n_pts_per_ray))
    xys_b = jnp.broadcast_to(xys, (B, H, W, 2))
    ray_bundle = (origins, directions, lengths, xys_b)
    return images, ray_bundle, 0


# ---------------------------------------------------------------------------
# Pure-JAX reference (for correctness check)
# ---------------------------------------------------------------------------
def _reference(origins, directions, lengths):
    pts = origins[..., None, :] + directions[..., None, :] * lengths[..., None]
    norm = jnp.linalg.norm(pts, axis=-1, keepdims=True)
    dens = jax.nn.sigmoid(-100.0 * norm)[..., 0]            # (B,H,W,P)
    feats = pts / jnp.maximum(norm, 1e-12) * 0.5 + 0.5      # (B,H,W,P,3)
    eps = 1e-10
    absorb = jnp.cumprod((1.0 + eps) - dens, axis=-1)
    absorb = jnp.concatenate(
        [jnp.ones_like(absorb[..., :1]), absorb[..., :-1]], axis=-1)
    w = dens * absorb
    rgb = (w[..., None] * feats).sum(axis=-2)
    opac = w.sum(axis=-1, keepdims=True)
    return jnp.concatenate([rgb, opac], axis=-1)


if __name__ == "__main__":
    key = jax.random.PRNGKey(0)
    B, H, W, P = 2, 16, 16, 8
    k1, _ = jax.random.split(key)
    # deterministic "cameras": centers near (0,0,-2), identity rotations
    cam_centers = jnp.array([[0.0, 0.0, -2.0]] * B, jnp.float32) + \
        0.05 * jax.random.normal(k1, (B, 3), jnp.float32)
    cam_rotations = jnp.broadcast_to(jnp.eye(3, dtype=jnp.float32), (B, 3, 3))

    images, ray_bundle, reg = custom_implicit_renderer_forward(
        cam_centers, cam_rotations, H=H, W=W, n_pts_per_ray=P)
    images = jax.block_until_ready(images)

    origins, directions, lengths, xys = ray_bundle
    ref = _reference(origins, directions, lengths)
    assert images.shape == (B, H, W, 4)
    assert reg == 0
    max_err = float(jnp.max(jnp.abs(images - ref)))
    assert jnp.allclose(images, ref, atol=1e-4, rtol=1e-4), \
        f"mismatch vs ref (max abs err {max_err})"
    print("KERNEL_OK")
</pallas_src>

<mosaic_0001>
module attributes {stable_mosaic.version = 11 : i64} {
  func.func @_render_kernel(%arg0: i32, %arg1: i32, %arg2: memref<24xf32, #tpu.memory_space<smem>>, %arg3: memref<1x4x256xf32, #tpu.memory_space<vmem>>) attributes {dimension_semantics = [#tpu.dimension_semantics<parallel>, #tpu.dimension_semantics<parallel>], iteration_bounds = array<i64: 2, 1>, scalar_prefetch = 0 : i64, scratch_operands = 0 : i64, tpu.core_type = #tpu.core_type<tc>, window_params = [{transform_indices = @transform_0, window_bounds = array<i64: 24>}, {transform_indices = @transform_1, window_bounds = array<i64: 1, 4, 256>}]} {
    %c12_i32 = arith.constant 12 : i32
    %0 = arith.muli %arg0, %c12_i32 : i32
    %c0_i32 = arith.constant 0 : i32
    %1 = arith.addi %0, %c0_i32 : i32
    %2 = arith.index_cast %1 : i32 to index
    %3 = memref.load %arg2[%2] : memref<24xf32, #tpu.memory_space<smem>>
    %c1_i32 = arith.constant 1 : i32
    %4 = arith.addi %0, %c1_i32 : i32
    %5 = arith.index_cast %4 : i32 to index
    %6 = memref.load %arg2[%5] : memref<24xf32, #tpu.memory_space<smem>>
    %c2_i32 = arith.constant 2 : i32
    %7 = arith.addi %0, %c2_i32 : i32
    %8 = arith.index_cast %7 : i32 to index
    %9 = memref.load %arg2[%8] : memref<24xf32, #tpu.memory_space<smem>>
    %c3_i32 = arith.constant 3 : i32
    %10 = arith.addi %0, %c3_i32 : i32
    %11 = arith.index_cast %10 : i32 to index
    %12 = memref.load %arg2[%11] : memref<24xf32, #tpu.memory_space<smem>>
    %c4_i32 = arith.constant 4 : i32
    %13 = arith.addi %0, %c4_i32 : i32
    %14 = arith.index_cast %13 : i32 to index
    %15 = memref.load %arg2[%14] : memref<24xf32, #tpu.memory_space<smem>>
    %c5_i32 = arith.constant 5 : i32
    %16 = arith.addi %0, %c5_i32 : i32
    %17 = arith.index_cast %16 : i32 to index
    %18 = memref.load %arg2[%17] : memref<24xf32, #tpu.memory_space<smem>>
    %c6_i32 = arith.constant 6 : i32
    %19 = arith.addi %0, %c6_i32 : i32
    %20 = arith.index_cast %19 : i32 to index
    %21 = memref.load %arg2[%20] : memref<24xf32, #tpu.memory_space<smem>>
    %c7_i32 = arith.constant 7 : i32
    %22 = arith.addi %0, %c7_i32 : i32
    %23 = arith.index_cast %22 : i32 to index
    %24 = memref.load %arg2[%23] : memref<24xf32, #tpu.memory_space<smem>>
    %c8_i32 = arith.constant 8 : i32
    %25 = arith.addi %0, %c8_i32 : i32
    %26 = arith.index_cast %25 : i32 to index
    %27 = memref.load %arg2[%26] : memref<24xf32, #tpu.memory_space<smem>>
    %c9_i32 = arith.constant 9 : i32
    %28 = arith.addi %0, %c9_i32 : i32
    %29 = arith.index_cast %28 : i32 to index
    %30 = memref.load %arg2[%29] : memref<24xf32, #tpu.memory_space<smem>>
    %c10_i32 = arith.constant 10 : i32
    %31 = arith.addi %0, %c10_i32 : i32
    %32 = arith.index_cast %31 : i32 to index
    %33 = memref.load %arg2[%32] : memref<24xf32, #tpu.memory_space<smem>>
    %c11_i32 = arith.constant 11 : i32
    %34 = arith.addi %0, %c11_i32 : i32
    %35 = arith.index_cast %34 : i32 to index
    %36 = memref.load %arg2[%35] : memref<24xf32, #tpu.memory_space<smem>>
    %37 = tpu.iota {dimensions = array<i32: 1>} : vector<1x256xi32>
    %c256_i32 = arith.constant 256 : i32
    %38 = arith.muli %arg1, %c256_i32 : i32
    %39 = vector.broadcast %38 : i32 to vector<1x256xi32>
    %40 = arith.addi %37, %39 : vector<1x256xi32>
    %41 = arith.sitofp %40 : vector<1x256xi32> to vector<1x256xf32>
    %cst = arith.constant 5.000000e-01 : f32
    %42 = vector.broadcast %cst : f32 to vector<1x256xf32>
    %43 = arith.addf %41, %42 : vector<1x256xf32>
    %cst_0 = arith.constant 6.250000e-02 : f32
    %44 = vector.broadcast %cst_0 : f32 to vector<1x256xf32>
    %45 = arith.mulf %43, %44 : vector<1x256xf32>
    %46 = math.floor %45 : vector<1x256xf32>
    %cst_1 = arith.constant 1.600000e+01 : f32
    %47 = vector.broadcast %cst_1 : f32 to vector<1x256xf32>
    %48 = arith.mulf %46, %47 : vector<1x256xf32>
    %49 = arith.subf %41, %48 : vector<1x256xf32>
    %cst_2 = arith.constant 0.13333334 : f32
    %50 = vector.broadcast %cst_2 : f32 to vector<1x256xf32>
    %51 = arith.mulf %49, %50 : vector<1x256xf32>
    %cst_3 = arith.constant 1.000000e+00 : f32
    %52 = vector.broadcast %cst_3 : f32 to vector<1x256xf32>
    %53 = arith.subf %51, %52 : vector<1x256xf32>
    %cst_4 = arith.constant 0.13333334 : f32
    %54 = vector.broadcast %cst_4 : f32 to vector<1x256xf32>
    %55 = arith.mulf %46, %54 : vector<1x256xf32>
    %cst_5 = arith.constant 1.000000e+00 : f32
    %56 = vector.broadcast %cst_5 : f32 to vector<1x256xf32>
    %57 = arith.subf %55, %56 : vector<1x256xf32>
    %58 = arith.mulf %53, %53 : vector<1x256xf32>
    %59 = arith.mulf %57, %57 : vector<1x256xf32>
    %60 = arith.addf %58, %59 : vector<1x256xf32>
    %cst_6 = arith.constant 1.000000e+00 : f32
    %61 = vector.broadcast %cst_6 : f32 to vector<1x256xf32>
    %62 = arith.addf %60, %61 : vector<1x256xf32>
    %63 = math.rsqrt %62 : vector<1x256xf32>
    %64 = arith.mulf %53, %63 : vector<1x256xf32>
    %65 = arith.mulf %57, %63 : vector<1x256xf32>
    %66 = vector.broadcast %12 : f32 to vector<1x256xf32>
    %67 = arith.mulf %66, %64 : vector<1x256xf32>
    %68 = vector.broadcast %15 : f32 to vector<1x256xf32>
    %69 = arith.mulf %68, %65 : vector<1x256xf32>
    %70 = arith.addf %67, %69 : vector<1x256xf32>
    %71 = vector.broadcast %18 : f32 to vector<1x256xf32>
    %72 = arith.mulf %71, %63 : vector<1x256xf32>
    %73 = arith.addf %70, %72 : vector<1x256xf32>
    %74 = vector.broadcast %21 : f32 to vector<1x256xf32>
    %75 = arith.mulf %74, %64 : vector<1x256xf32>
    %76 = vector.broadcast %24 : f32 to vector<1x256xf32>
    %77 = arith.mulf %76, %65 : vector<1x256xf32>
    %78 = arith.addf %75, %77 : vector<1x256xf32>
    %79 = vector.broadcast %27 : f32 to vector<1x256xf32>
    %80 = arith.mulf %79, %63 : vector<1x256xf32>
    %81 = arith.addf %78, %80 : vector<1x256xf32>
    %82 = vector.broadcast %30 : f32 to vector<1x256xf32>
    %83 = arith.mulf %82, %64 : vector<1x256xf32>
    %84 = vector.broadcast %33 : f32 to vector<1x256xf32>
    %85 = arith.mulf %84, %65 : vector<1x256xf32>
    %86 = arith.addf %83, %85 : vector<1x256xf32>
    %87 = vector.broadcast %36 : f32 to vector<1x256xf32>
    %88 = arith.mulf %87, %63 : vector<1x256xf32>
    %89 = arith.addf %86, %88 : vector<1x256xf32>
    %90 = tpu.iota {dimensions = array<i32: 0>} : vector<8x256xi32>
    %91 = arith.sitofp %90 : vector<8x256xi32> to vector<8x256xf32>
    %cst_7 = arith.constant 0.285714298 : f32
    %92 = vector.broadcast %cst_7 : f32 to vector<8x256xf32>
    %93 = arith.mulf %92, %91 : vector<8x256xf32>
    %cst_8 = arith.constant 5.000000e-01 : f32
    %94 = vector.broadcast %cst_8 : f32 to vector<8x256xf32>
    %95 = arith.addf %94, %93 : vector<8x256xf32>
    %96 = vector.broadcast %73 : vector<1x256xf32> to vector<8x256xf32>
    %97 = arith.mulf %96, %95 : vector<8x256xf32>
    %98 = vector.broadcast %3 : f32 to vector<8x256xf32>
    %99 = arith.addf %98, %97 : vector<8x256xf32>
    %100 = vector.broadcast %81 : vector<1x256xf32> to vector<8x256xf32>
    %101 = arith.mulf %100, %95 : vector<8x256xf32>
    %102 = vector.broadcast %6 : f32 to vector<8x256xf32>
    %103 = arith.addf %102, %101 : vector<8x256xf32>
    %104 = vector.broadcast %89 : vector<1x256xf32> to vector<8x256xf32>
    %105 = arith.mulf %104, %95 : vector<8x256xf32>
    %106 = vector.broadcast %9 : f32 to vector<8x256xf32>
    %107 = arith.addf %106, %105 : vector<8x256xf32>
    %108 = arith.mulf %99, %99 : vector<8x256xf32>
    %109 = arith.mulf %103, %103 : vector<8x256xf32>
    %110 = arith.addf %108, %109 : vector<8x256xf32>
    %111 = arith.mulf %107, %107 : vector<8x256xf32>
    %112 = arith.addf %110, %111 : vector<8x256xf32>
    %cst_9 = arith.constant 1.000000e-24 : f32
    %113 = vector.broadcast %cst_9 : f32 to vector<8x256xf32>
    %114 = arith.maximumf %112, %113 : vector<8x256xf32>
    %115 = math.rsqrt %114 : vector<8x256xf32>
    %116 = arith.mulf %112, %115 : vector<8x256xf32>
    %cst_10 = arith.constant -1.000000e+02 : f32
    %117 = vector.broadcast %cst_10 : f32 to vector<8x256xf32>
    %118 = arith.mulf %117, %116 : vector<8x256xf32>
    %119 = arith.negf %118 : vector<8x256xf32>
    %120 = math.exp %119 : vector<8x256xf32>
    %cst_11 = arith.constant 1.000000e+00 : f32
    %121 = vector.broadcast %cst_11 : f32 to vector<8x256xf32>
    %122 = arith.addf %121, %120 : vector<8x256xf32>
    %123 = arith.divf %121, %122 : vector<8x256xf32>
    %cst_12 = arith.constant 1.000000e+00 : f32
    %124 = vector.broadcast %cst_12 : f32 to vector<8x256xf32>
    %125 = arith.subf %124, %123 : vector<8x256xf32>
    %c1_i32_13 = arith.constant 1 : i32
    %126 = vector.broadcast %c1_i32_13 : i32 to vector<8x256xi32>
    %127 = arith.cmpi slt, %90, %126 : vector<8x256xi32>
    %c1_i32_14 = arith.constant 1 : i32
    %128 = tpu.dynamic_rotate %125 by %c1_i32_14 dim 0 : vector<8x256xf32>, i32 -> vector<8x256xf32>
    %cst_15 = arith.constant 1.000000e+00 : f32
    %129 = vector.broadcast %cst_15 : f32 to vector<8x256xf32>
    %130 = arith.select %127, %129, %128 : vector<8x256xi1>, vector<8x256xf32>
    %c1_i32_16 = arith.constant 1 : i32
    %131 = vector.broadcast %c1_i32_16 : i32 to vector<8x256xi32>
    %132 = arith.cmpi slt, %90, %131 : vector<8x256xi32>
    %c1_i32_17 = arith.constant 1 : i32
    %133 = tpu.dynamic_rotate %130 by %c1_i32_17 dim 0 : vector<8x256xf32>, i32 -> vector<8x256xf32>
    %cst_18 = arith.constant 1.000000e+00 : f32
    %134 = vector.broadcast %cst_18 : f32 to vector<8x256xf32>
    %135 = arith.select %132, %134, %133 : vector<8x256xi1>, vector<8x256xf32>
    %136 = arith.mulf %130, %135 : vector<8x256xf32>
    %c2_i32_19 = arith.constant 2 : i32
    %137 = vector.broadcast %c2_i32_19 : i32 to vector<8x256xi32>
    %138 = arith.cmpi slt, %90, %137 : vector<8x256xi32>
    %c2_i32_20 = arith.constant 2 : i32
    %139 = tpu.dynamic_rotate %136 by %c2_i32_20 dim 0 : vector<8x256xf32>, i32 -> vector<8x256xf32>
    %cst_21 = arith.constant 1.000000e+00 : f32
    %140 = vector.broadcast %cst_21 : f32 to vector<8x256xf32>
    %141 = arith.select %138, %140, %139 : vector<8x256xi1>, vector<8x256xf32>
    %142 = arith.mulf %136, %141 : vector<8x256xf32>
    %c4_i32_22 = arith.constant 4 : i32
    %143 = vector.broadcast %c4_i32_22 : i32 to vector<8x256xi32>
    %144 = arith.cmpi slt, %90, %143 : vector<8x256xi32>
    %c4_i32_23 = arith.constant 4 : i32
    %145 = tpu.dynamic_rotate %142 by %c4_i32_23 dim 0 : vector<8x256xf32>, i32 -> vector<8x256xf32>
    %cst_24 = arith.constant 1.000000e+00 : f32
    %146 = vector.broadcast %cst_24 : f32 to vector<8x256xf32>
    %147 = arith.select %144, %146, %145 : vector<8x256xi1>, vector<8x256xf32>
    %148 = arith.mulf %142, %147 : vector<8x256xf32>
    %149 = arith.mulf %123, %148 : vector<8x256xf32>
    %150 = arith.mulf %149, %115 : vector<8x256xf32>
    %151 = arith.mulf %150, %99 : vector<8x256xf32>
    %cst_25 = arith.constant dense<0.000000e+00> : vector<256xf32>
    %152 = vector.multi_reduction <add>, %151, %cst_25 [0] : vector<8x256xf32> to vector<256xf32>
    %153 = vector.shape_cast %152 : vector<256xf32> to vector<1x256xf32>
    %154 = arith.mulf %150, %103 : vector<8x256xf32>
    %cst_26 = arith.constant dense<0.000000e+00> : vector<256xf32>
    %155 = vector.multi_reduction <add>, %154, %cst_26 [0] : vector<8x256xf32> to vector<256xf32>
    %156 = vector.shape_cast %155 : vector<256xf32> to vector<1x256xf32>
    %157 = arith.mulf %150, %107 : vector<8x256xf32>
    %cst_27 = arith.constant dense<0.000000e+00> : vector<256xf32>
    %158 = vector.multi_reduction <add>, %157, %cst_27 [0] : vector<8x256xf32> to vector<256xf32>
    %159 = vector.shape_cast %158 : vector<256xf32> to vector<1x256xf32>
    %cst_28 = arith.constant dense<0.000000e+00> : vector<256xf32>
    %160 = vector.multi_reduction <add>, %149, %cst_28 [0] : vector<8x256xf32> to vector<256xf32>
    %161 = vector.shape_cast %160 : vector<256xf32> to vector<1x256xf32>
    %cst_29 = arith.constant 5.000000e-01 : f32
    %162 = vector.broadcast %cst_29 : f32 to vector<1x256xf32>
    %163 = arith.mulf %162, %161 : vector<1x256xf32>
    %cst_30 = arith.constant 5.000000e-01 : f32
    %164 = vector.broadcast %cst_30 : f32 to vector<1x256xf32>
    %165 = arith.mulf %164, %153 : vector<1x256xf32>
    %166 = arith.addf %165, %163 : vector<1x256xf32>
    %c0 = arith.constant 0 : index
    %c0_31 = arith.constant 0 : index
    %c0_32 = arith.constant 0 : index
    %167 = vector.load %arg3[%c0, %c0_31, %c0_32] : memref<1x4x256xf32, #tpu.memory_space<vmem>>, vector<1x1x256xf32>
    %168 = vector.shape_cast %167 : vector<1x1x256xf32> to vector<1x256xf32>
    %169 = vector.shape_cast %166 : vector<1x256xf32> to vector<1x1x256xf32>
    tpu.vector_store %arg3[%c0, %c0_31, %c0_32], %169 {strides = array<i32>} : memref<1x4x256xf32, #tpu.memory_space<vmem>>, vector<1x1x256xf32>,
    %cst_33 = arith.constant 5.000000e-01 : f32
    %170 = vector.broadcast %cst_33 : f32 to vector<1x256xf32>
    %171 = arith.mulf %170, %156 : vector<1x256xf32>
    %172 = arith.addf %171, %163 : vector<1x256xf32>
    %c0_34 = arith.constant 0 : index
    %c1 = arith.constant 1 : index
    %c0_35 = arith.constant 0 : index
    %173 = vector.load %arg3[%c0_34, %c1, %c0_35] : memref<1x4x256xf32, #tpu.memory_space<vmem>>, vector<1x1x256xf32>
    %174 = vector.shape_cast %173 : vector<1x1x256xf32> to vector<1x256xf32>
    %175 = vector.shape_cast %172 : vector<1x256xf32> to vector<1x1x256xf32>
    tpu.vector_store %arg3[%c0_34, %c1, %c0_35], %175 {strides = array<i32>} : memref<1x4x256xf32, #tpu.memory_space<vmem>>, vector<1x1x256xf32>,
    %cst_36 = arith.constant 5.000000e-01 : f32
    %176 = vector.broadcast %cst_36 : f32 to vector<1x256xf32>
    %177 = arith.mulf %176, %159 : vector<1x256xf32>
    %178 = arith.addf %177, %163 : vector<1x256xf32>
    %c0_37 = arith.constant 0 : index
    %c2 = arith.constant 2 : index
    %c0_38 = arith.constant 0 : index
    %179 = vector.load %arg3[%c0_37, %c2, %c0_38] : memref<1x4x256xf32, #tpu.memory_space<vmem>>, vector<1x1x256xf32>
    %180 = vector.shape_cast %179 : vector<1x1x256xf32> to vector<1x256xf32>
    %181 = vector.shape_cast %178 : vector<1x256xf32> to vector<1x1x256xf32>
    tpu.vector_store %arg3[%c0_37, %c2, %c0_38], %181 {strides = array<i32>} : memref<1x4x256xf32, #tpu.memory_space<vmem>>, vector<1x1x256xf32>,
    %c0_39 = arith.constant 0 : index
    %c3 = arith.constant 3 : index
    %c0_40 = arith.constant 0 : index
    %182 = vector.load %arg3[%c0_39, %c3, %c0_40] : memref<1x4x256xf32, #tpu.memory_space<vmem>>, vector<1x1x256xf32>
    %183 = vector.shape_cast %182 : vector<1x1x256xf32> to vector<1x256xf32>
    %184 = vector.shape_cast %161 : vector<1x256xf32> to vector<1x1x256xf32>
    tpu.vector_store %arg3[%c0_39, %c3, %c0_40], %184 {strides = array<i32>} : memref<1x4x256xf32, #tpu.memory_space<vmem>>, vector<1x1x256xf32>,
    return
  }
  func.func @transform_0(%arg0: i32, %arg1: i32) -> i32 {
    %c0_i32 = arith.constant 0 : i32
    %c0_i32_0 = arith.constant 0 : i32
    return %c0_i32 : i32
  }
  func.func @transform_1(%arg0: i32, %arg1: i32) -> (i32, i32, i32) {
    %c0_i32 = arith.constant 0 : i32
    %c0_i32_0 = arith.constant 0 : i32
    return %arg0, %c0_i32, %arg1 : i32, i32, i32
  }
}

</mosaic_0001>

<llo_original>
// kernel: tpu_custom_call.1
$region0: #{tpu_custom_call.1}
  #allocation0 [shape = 'u32[]', space=smem, size = 0x4, offset = 0x4, fixed_abs, tag = 'smem constant byte address 0x4 - core index']
  #allocation1 [shape = 'u32[144,128]{1,0:T(1,128)}', space=vmem, size = 0x12000, scoped, tag = 'internal scratch']
  %s0 = inlined_call_operand.hbm [shape: f32[24], index: 0, kind: input, shape index: {}]
  %s1 = inlined_call_operand.hbm [shape: f32[2,4,256], index: 1, kind: output, shape index: {}]
  %s2 = sld [smem:[#allocation0]]
  $region41: #{tpu_custom_call.1} parent=0
    _
  %s4 = ssub.s32 1, %s2
  %s5 = scalar_select 0, %s4, %s2
  $region1: #{tpu_custom_call.1} parent=0
    #allocation2 [shape = 'u8[512]{0}', space=smem, size = 0x200, scoped, tag = 'input window, operand 0, single buffered']
    #allocation3 [shape = 's32[2]{0}', space=sflag, size = 0x8, scoped, tag = 'scoped memory for tpu_custom_call.1']
    #allocation4 [shape = 's32[2]{0}', space=sflag, size = 0x8, scoped, tag = 'scoped memory for tpu_custom_call.1']
    #allocation5 [shape = 'u8[8192]{0}', space=vmem, size = 0x2000, scoped, tag = 'output window, operand 0']
    %6 = vsyncpa [#allocation4], 0
    %7 = vsyncpa [#allocation3], 0
    %s8 = scalar_lea.sflag [#allocation3], 1
    %9 = vsyncpa %s8, 0
    loop: start=0, step=1, limit=4
    $region2: #{tpu_custom_call.1} parent=1 // loop_pre_header
      _
    $region3: #{tpu_custom_call.1} parent=1 // loop_header
      %s11 = sphi 0, %s15
      %p12 = scmp.ge.s32.totalorder %s11, 4
      %s18 = sphi 0, %s30
      %s19 = sphi 0, %s26
      %s20 = sphi 0, %s18
      %s21 = sphi 0, %s19
      %s22 = sphi 0, %s20
      %s23 = sphi 0, %s21
      %s31 = sphi 0, %s31
      %s33 = sphi 0, %s31
      %s34 = sphi 0, %s33
      %s48 = sphi 0, %s34
      %s56 = sphi 0, %s58
      %s59 = sphi 0, %s56
      %s60 = sphi 0, %s59
      %s76 = sphi 0, %s60
    $region4: #{tpu_custom_call.1} parent=1 // loop_header_branch
      %14 = sbr.rel (%p12) target = $region8
    $region5: #{tpu_custom_call.1} parent=1 // loop_body
      %s16 = ssub.s32 %s11, 1
      %s17 = ssub.s32 %s11, 2
      %s24 = sadd.s32 1, %s19
      %p25 = scmp.ge.s32.totalorder %s24, 1
      %s26 = scalar_select %p25, 0, %s24
      %s27 = sadd.s32 1, %s18
      %s28 = scalar_select %p25, %s27, %s18
      %p29 = scmp.ge.s32.totalorder %s28, 2
      %s30 = scalar_select %p29, 0, %s28
      %s32 = sadd.s32 %s31, 1
      %p35 = scmp.eq.s32.totalorder %s11, 1
      %p36 = scmp.ne.s32.totalorder %s31, %s33
      %p37 = scmp.eq.s32.totalorder %s11, 0
      %p38 = por %p36, %p37
      %p39 = scmp.ne.s32.totalorder %s31, %s33
      %p40 = scmp.eq.s32.totalorder %s16, 1
      %p41 = por %p39, %p40
      %p42 = scmp.ne.s32.totalorder %s33, %s34
      %p43 = scmp.eq.s32.totalorder %s16, 0
      %p44 = por %p42, %p43
      %p45 = scmp.ne.s32.totalorder %s33, %s34
      %p46 = scmp.eq.s32.totalorder %s17, 1
      %p47 = por %p45, %p46
      %p49 = scmp.ne.s32.totalorder %s34, %s48
      %p50 = scmp.eq.s32.totalorder %s17, 0
      %p51 = por %p49, %p50
      %s52 = ssub.s32 %s18, %s30
      %s53 = ssub.s32 %s19, %s26
      %s54 = sor.u32 %s52, %s53
      %p55 = scmp.eq.s32.totalorder %s54, 0
      %s57 = sadd.s32 %s56, 1
      %s58 = scalar_select %p55, %s56, %s57
      %p61 = pneg %p55
      %p62 = scmp.eq.s32.totalorder %s11, 1
      %p63 = por %p61, %p62
      %p64 = scmp.ne.s32.totalorder %s56, %s59
      %p65 = scmp.eq.s32.totalorder %s11, 0
      %p66 = por %p64, %p65
      %p67 = scmp.ne.s32.totalorder %s56, %s59
      %p68 = scmp.eq.s32.totalorder %s16, 1
      %p69 = por %p67, %p68
      %p70 = scmp.ne.s32.totalorder %s59, %s60
      %p71 = scmp.eq.s32.totalorder %s16, 0
      %p72 = por %p70, %p71
      %p73 = scmp.ne.s32.totalorder %s59, %s60
      %p74 = scmp.eq.s32.totalorder %s17, 1
      %p75 = por %p73, %p74
      %p77 = scmp.ne.s32.totalorder %s60, %s76
      %p78 = scmp.eq.s32.totalorder %s17, 0
      %p79 = por %p77, %p78
      %p80 = scmp.le.s32.totalorder 1, %s11
      %p81 = scmp.lt.s32.totalorder %s11, 3
      %p82 = pnand %p80, %p81
      %p83 = pneg %p82
      // Predicated region
      $region9: #{tpu_custom_call.1} parent=5 // pred_check
        _
      $region10: #{tpu_custom_call.1} parent=5 // pred_check_branch
        %85 = sbr.rel (%p82) target = $region12
      $region11: #{tpu_custom_call.1} parent=5 // pred_region
        %s86 = ssub.s32 %s11, 1
        // Predicated region
        $region13: #{tpu_custom_call.1} parent=11 // pred_check
          %p87 = pneg %p44
        $region14: #{tpu_custom_call.1} parent=11 // pred_check_branch
          %89 = sbr.rel (%p87) target = $region16
        $region15: #{tpu_custom_call.1} parent=11 // pred_region
          %s91 = ssub.s32 16, 16
          %92 = vsyncadd [#allocation4], %s91
          %95 = dma.hbm_to_smem %s0, 16, [#allocation2], [#allocation4]
        $region16: #{tpu_custom_call.1} parent=11 // pred_fallthru
          _
      $region12: #{tpu_custom_call.1} parent=5 // pred_fallthru
        _
      %p96 = scmp.lt.s32.totalorder %s11, 2
      // Predicated region
      $region17: #{tpu_custom_call.1} parent=5 // pred_check
        %p97 = pneg %p96
      $region18: #{tpu_custom_call.1} parent=5 // pred_check_branch
        %99 = sbr.rel (%p97) target = $region20
      $region19: #{tpu_custom_call.1} parent=5 // pred_region
        _
      $region20: #{tpu_custom_call.1} parent=5 // pred_fallthru
        _
      %p100 = scmp.le.s32.totalorder 1, %s11
      %p101 = scmp.lt.s32.totalorder %s11, 3
      %p102 = pnand %p100, %p101
      %p103 = pneg %p102
      // Predicated region
      $region21: #{tpu_custom_call.1} parent=5 // pred_check
        _
      $region22: #{tpu_custom_call.1} parent=5 // pred_check_branch
        %105 = sbr.rel (%p102) target = $region24
      $region23: #{tpu_custom_call.1} parent=5 // pred_region
        %s106 = ssub.s32 %s11, 1
        // Predicated region
        $region25: #{tpu_custom_call.1} parent=23 // pred_check
          %p107 = pneg %p44
        $region26: #{tpu_custom_call.1} parent=23 // pred_check_branch
          %109 = sbr.rel (%p107) target = $region28
        $region27: #{tpu_custom_call.1} parent=23 // pred_region
          %110 = dma.done [#allocation4], 16
        $region28: #{tpu_custom_call.1} parent=23 // pred_fallthru
          _
        %111 = sfence
        %p112 = pneg %p44
        %p113 = pneg %p41
        %p114 = pneg %p72
        %p115 = pneg %p69
        %s116 = sand.u32 %s59, 1
        %s117 = scalar_lea.sflag [#allocation3], %s116
        %s118 = sand.u32 %s59, 1
        %s119 = smul.addr %s118, 8
        %s120 = scalar_lea.vmem [#allocation5], %s119
        %s121 = smul.u32 2, %s21
        %s122 = smul.u32 %s20, 12
        %s123 = sld [smem:[#allocation2 + %s122]]
        %s124 = sadd.s32 %s122, 1
        %s125 = sld [smem:[#allocation2 + %s124]]
        %s126 = sadd.s32 %s122, 2
        %s127 = sld [smem:[#allocation2 + %s126]]
        %s128 = sadd.s32 %s122, 3
        %s129 = sld [smem:[#allocation2 + %s128]]
        %s130 = sadd.s32 %s122, 4
        %s131 = sld [smem:[#allocation2 + %s130]]
        %s132 = sadd.s32 %s122, 5
        %s133 = sld [smem:[#allocation2 + %s132]]
        %s134 = sadd.s32 %s122, 6
        %s135 = sld [smem:[#allocation2 + %s134]]
        %s136 = sadd.s32 %s122, 7
        %s137 = sld [smem:[#allocation2 + %s136]]
        %s138 = sadd.s32 %s122, 8
        %s139 = sld [smem:[#allocation2 + %s138]]
        %s140 = sadd.s32 %s122, 9
        %s141 = sld [smem:[#allocation2 + %s140]]
        %s142 = sadd.s32 %s122, 10
        %s143 = sld [smem:[#allocation2 + %s142]]
        %s144 = sadd.s32 %s122, 11
        %s145 = sld [smem:[#allocation2 + %s144]]
        %v146 = vlaneseq
        %v147 = vand.u32 %v146, 127
        %v148 = vadd.s32 %v147, 128
        %s149 = smul.u32 %s21, 256
        %v150 = vstv %s149
        %v151 = vadd.s32 %v147, %v150
        %v152 = vadd.s32 %v148, %v150
        %v153 = vcvt.s32.f32 %v151
        %v154 = vcvt.s32.f32 %v152
        %v155 = vadd.f32 %v153, 0.5
        %v156 = vadd.f32 %v154, 0.5
        %v157 = vmul.f32 %v155, 0.0625
        %v158 = vmul.f32 %v156, 0.0625
        %v159 = vfloor.f32 %v157
        %v160 = vfloor.f32 %v158
        %v161 = vmul.f32 %v159, 16.0
        %v162 = vmul.f32 %v160, 16.0
        %v163 = vsub.f32 %v153, %v161
        %v164 = vsub.f32 %v154, %v162
        %v165 = vmul.f32 %v163, 0.13333334
        %v166 = vmul.f32 %v164, 0.13333334
        %v167 = vsub.f32 %v165, 1.0
        %v168 = vsub.f32 %v166, 1.0
        %v169 = vmul.f32 %v159, 0.13333334
        %v170 = vmul.f32 %v160, 0.13333334
        %v171 = vsub.f32 %v169, 1.0
        %v172 = vsub.f32 %v170, 1.0
        %v173 = vmul.f32 %v167, %v167
        %v174 = vmul.f32 %v168, %v168
        %v175 = vmul.f32 %v171, %v171
        %v176 = vmul.f32 %v172, %v172
        %v177 = vadd.f32 %v173, %v175
        %v178 = vadd.f32 %v174, %v176
        %v179 = vadd.f32 %v177, 1.0
        %v180 = vadd.f32 %v178, 1.0
        %v181 = vrsqrt.pop %v179
        %v182 = vrsqrt.pop %v180
        %v183 = vmul.f32 %v167, %v181
        %v184 = vmul.f32 %v168, %v182
        %v185 = vmul.f32 %v171, %v181
        %v186 = vmul.f32 %v172, %v182
        %v187 = vstv %s129
        %v188 = vmul.f32 %v187, %v183
        %v189 = vmul.f32 %v187, %v184
        %v190 = vstv %s131
        %v191 = vmul.f32 %v190, %v185
        %v192 = vmul.f32 %v190, %v186
        %v193 = vadd.f32 %v188, %v191
        %v194 = vadd.f32 %v189, %v192
        %v195 = vstv %s133
        %v196 = vmul.f32 %v195, %v181
        %v197 = vmul.f32 %v195, %v182
        %v198 = vadd.f32 %v193, %v196
        %v199 = vadd.f32 %v194, %v197
        %v200 = vstv %s135
        %v201 = vmul.f32 %v200, %v183
        %v202 = vmul.f32 %v200, %v184
        %v203 = vstv %s137
        %v204 = vmul.f32 %v203, %v185
        %v205 = vmul.f32 %v203, %v186
        %v206 = vadd.f32 %v201, %v204
        %v207 = vadd.f32 %v202, %v205
        %v208 = vstv %s139
        %v209 = vmul.f32 %v208, %v181
        %v210 = vmul.f32 %v208, %v182
        %v211 = vadd.f32 %v206, %v209
        %v212 = vadd.f32 %v207, %v210
        %v213 = vstv %s141
        %v214 = vmul.f32 %v213, %v183
        %v215 = vmul.f32 %v213, %v184
        %v216 = vstv %s143
        %v217 = vmul.f32 %v216, %v185
        %v218 = vmul.f32 %v216, %v186
        %v219 = vadd.f32 %v214, %v217
        %v220 = vadd.f32 %v215, %v218
        %v221 = vstv %s145
        %v222 = vmul.f32 %v221, %v181
        %v223 = vmul.f32 %v221, %v182
        %v224 = vadd.f32 %v219, %v222
        %v225 = vadd.f32 %v220, %v223
        %v226 = vlaneseq
        %v227 = vshrl.u32 %v226, 7
        %v228 = vcvt.s32.f32 %v227
        %v229 = vmul.f32 %v228, 0.2857143
        %v230 = vadd.f32 %v229, 0.5
        %v231 = vmul.f32 %v198, %v230
        %v232 = vmul.f32 %v199, %v230
        %v233 = vstv %s123
        %v234 = vadd.f32 %v233, %v231
        %v235 = vadd.f32 %v233, %v232
        %v236 = vmul.f32 %v211, %v230
        %v237 = vmul.f32 %v212, %v230
        %v238 = vstv %s125
        %v239 = vadd.f32 %v238, %v236
        %v240 = vadd.f32 %v238, %v237
        %v241 = vmul.f32 %v224, %v230
        %v242 = vmul.f32 %v225, %v230
        %v243 = vstv %s127
        %v244 = vadd.f32 %v243, %v241
        %v245 = vadd.f32 %v243, %v242
        %v246 = vmul.f32 %v234, %v234
        %v247 = vmul.f32 %v235, %v235
        %v248 = vmul.f32 %v239, %v239
        %v249 = vmul.f32 %v240, %v240
        %v250 = vadd.f32 %v246, %v248
        %v251 = vadd.f32 %v247, %v249
        %v252 = vmul.f32 %v244, %v244
        %v253 = vmul.f32 %v245, %v245
        %v254 = vadd.f32 %v250, %v252
        %v255 = vadd.f32 %v251, %v253
        %v256 = vmax.f32 %v254, 1e-24
        %v257 = vmax.f32 %v255, 1e-24
        %v258 = vrsqrt.pop %v256
        %v259 = vrsqrt.pop %v257
        %v260 = vmul.f32 %v254, %v258
        %v261 = vmul.f32 %v255, %v259
        %v262 = vmul.f32 %v260, -100.0
        %v263 = vmul.f32 %v261, -100.0
        %v264 = vxor.u32 %v262, 2147483648
        %v265 = vxor.u32 %v263, 2147483648
        %v266 = vmul.f32 %v264, 1.442695
        %v267 = vpow.pop %v266
        %v268 = vmul.f32 %v265, 1.442695
        %v269 = vpow.pop %v268
        %v270 = vadd.f32 %v267, 1.0
        %v271 = vadd.f32 %v269, 1.0
        %v272 = vrcp.pop %v270
        %v273 = vmul.f32 1.0, %v272
        %v274 = vrcp.pop %v271
        %v275 = vmul.f32 1.0, %v274
        %v276 = vsub.f32 1.0, %v273
        %v277 = vsub.f32 1.0, %v275
        %vm278 = vcmp.lt.s32.totalorder %v227, 1
        %v279 = vrot.slane %v276, 7
        %v280 = vrot.slane %v277, 7
        %v281 = vsel %vm278, 1.0, %v279
        %v282 = vsel %vm278, 1.0, %v280
        %v283 = vrot.slane %v281, 7
        %v284 = vrot.slane %v282, 7
        %v285 = vsel %vm278, 1.0, %v283
        %v286 = vsel %vm278, 1.0, %v284
        %v287 = vmul.f32 %v281, %v285
        %v288 = vmul.f32 %v282, %v286
        %vm289 = vcmp.lt.s32.totalorder %v227, 2
        %v290 = vrot.slane %v287, 6
        %v291 = vrot.slane %v288, 6
        %v292 = vsel %vm289, 1.0, %v290
        %v293 = vsel %vm289, 1.0, %v291
        %v294 = vmul.f32 %v287, %v292
        %v295 = vmul.f32 %v288, %v293
        %vm296 = vcmp.lt.s32.totalorder %v227, 4
        %v297 = vrot.slane %v294, 4
        %v298 = vrot.slane %v295, 4
        %v299 = vsel %vm296, 1.0, %v297
        %v300 = vsel %vm296, 1.0, %v298
        %v301 = vmul.f32 %v294, %v299
        %v302 = vmul.f32 %v295, %v300
        %v303 = vmul.f32 %v273, %v301
        %v304 = vmul.f32 %v275, %v302
        %v305 = vmul.f32 %v303, %v258
        %v306 = vmul.f32 %v304, %v259
        %v307 = vmul.f32 %v305, %v234
        %v308 = vmul.f32 %v306, %v235
        %v309 = vrot.slane %v307, 4
        %v310 = vadd.f32 %v307, %v309
        %v311 = vrot.slane %v310, 2
        %v312 = vadd.f32 %v310, %v311
        %v313 = vrot.slane %v312, 1
        %v314 = vadd.f32 %v312, %v313
        %v315 = vrot.slane %v308, 4
        %v316 = vadd.f32 %v308, %v315
        %v317 = vrot.slane %v316, 2
        %v318 = vadd.f32 %v316, %v317
        %v319 = vrot.slane %v318, 1
        %v320 = vadd.f32 %v318, %v319
        %v321 = vmul.f32 %v305, %v239
        %v322 = vmul.f32 %v306, %v240
        %v323 = vrot.slane %v321, 4
        %v324 = vadd.f32 %v321, %v323
        %v325 = vrot.slane %v324, 2
        %v326 = vadd.f32 %v324, %v325
        %v327 = vrot.slane %v326, 1
        %v328 = vadd.f32 %v326, %v327
        %v329 = vrot.slane %v322, 4
        %v330 = vadd.f32 %v322, %v329
        %v331 = vrot.slane %v330, 2
        %v332 = vadd.f32 %v330, %v331
        %v333 = vrot.slane %v332, 1
        %v334 = vadd.f32 %v332, %v333
        %v335 = vmul.f32 %v305, %v244
        %v336 = vmul.f32 %v306, %v245
        %v337 = vrot.slane %v335, 4
        %v338 = vadd.f32 %v335, %v337
        %v339 = vrot.slane %v338, 2
        %v340 = vadd.f32 %v338, %v339
        %v341 = vrot.slane %v340, 1
        %v342 = vadd.f32 %v340, %v341
        %v343 = vrot.slane %v336, 4
        %v344 = vadd.f32 %v336, %v343
        %v345 = vrot.slane %v344, 2
        %v346 = vadd.f32 %v344, %v345
        %v347 = vrot.slane %v346, 1
        %v348 = vadd.f32 %v346, %v347
        %v349 = vrot.slane %v303, 4
        %v350 = vadd.f32 %v303, %v349
        %v351 = vrot.slane %v350, 2
        %v352 = vadd.f32 %v350, %v351
        %v353 = vrot.slane %v352, 1
        %v354 = vadd.f32 %v352, %v353
        %v355 = vrot.slane %v304, 4
        %v356 = vadd.f32 %v304, %v355
        %v357 = vrot.slane %v356, 2
        %v358 = vadd.f32 %v356, %v357
        %v359 = vrot.slane %v358, 1
        %v360 = vadd.f32 %v358, %v359
        %v361 = vmul.f32 %v354, 0.5
        %v362 = vmul.f32 %v360, 0.5
        %v363 = vmul.f32 %v314, 0.5
        %v364 = vmul.f32 %v320, 0.5
        %v365 = vadd.f32 %v363, %v361
        %v366 = vadd.f32 %v364, %v362
        %v369 = vcombine.low %v365, %v366
        %v371 = vunpack.c.l.s4 1966171168
        %v372 = vunpack.c.0.s8 %v371
        %v373 = vlaneseq
        %v374 = vshrl.u32 %v373, 7
        %v375 = vsub.s32 %v372, %v374
        %v376 = vrot.slane %v369, %v375
        %v378 = vunpack.c.l.s4 1966171168
        %v379 = vunpack.c.0.s8 %v378
        %v380 = vlaneseq
        %v381 = vshrl.u32 %v380, 7
        %v382 = vsub.s32 %v379, %v381
        %v383 = vrot.slane %v376, %v382
        %v385 = vlaneseq
        %vm386 = vcmp.ge.s32.totalorder %v385, 0
        %vm387 = vcmp.lt.s32.totalorder %v385, 256
        %vm388 = vmand %vm386, %vm387
        %389 = vst.msk [vmem:[%s120] ss:$4 sm:$0x3] %vm388, %v383
        %v390 = vmul.f32 %v328, 0.5
        %v391 = vmul.f32 %v334, 0.5
        %v392 = vadd.f32 %v390, %v361
        %v393 = vadd.f32 %v391, %v362
        %v396 = vcombine.low %v392, %v393
        %v398 = vunpack.c.l.s4 1966171168
        %v399 = vunpack.c.0.s8 %v398
        %v400 = vlaneseq
        %v401 = vshrl.u32 %v400, 7
        %v402 = vsub.s32 %v399, %v401
        %v403 = vrot.slane %v396, %v402
        %v405 = vunpack.c.l.s4 1966171168
        %v406 = vunpack.c.0.s8 %v405
        %v407 = vlaneseq
        %v408 = vshrl.u32 %v407, 7
        %v409 = vsub.s32 %v406, %v408
        %v410 = vrot.slane %v403, %v409
        %s412 = scalar_lea.vmem %s120, 1 [#allocation5]
        %413 = vst.msk [vmem:[%s412] ss:$4 sm:$0x3] %vm388, %v410
        %v414 = vmul.f32 %v342, 0.5
        %v415 = vmul.f32 %v348, 0.5
        %v416 = vadd.f32 %v414, %v361
        %v417 = vadd.f32 %v415, %v362
        %v420 = vcombine.low %v416, %v417
        %v422 = vunpack.c.l.s4 1966171168
        %v423 = vunpack.c.0.s8 %v422
        %v424 = vlaneseq
        %v425 = vshrl.u32 %v424, 7
        %v426 = vsub.s32 %v423, %v425
        %v427 = vrot.slane %v420, %v426
        %v429 = vunpack.c.l.s4 1966171168
        %v430 = vunpack.c.0.s8 %v429
        %v431 = vlaneseq
        %v432 = vshrl.u32 %v431, 7
        %v433 = vsub.s32 %v430, %v432
        %v434 = vrot.slane %v427, %v433
        %s436 = scalar_lea.vmem %s120, 2 [#allocation5]
        %437 = vst.msk [vmem:[%s436] ss:$4 sm:$0x3] %vm388, %v434
        %v440 = vcombine.low %v354, %v360
        %v442 = vunpack.c.l.s4 1966171168
        %v443 = vunpack.c.0.s8 %v442
        %v444 = vlaneseq
        %v445 = vshrl.u32 %v444, 7
        %v446 = vsub.s32 %v443, %v445
        %v447 = vrot.slane %v440, %v446
        %v449 = vunpack.c.l.s4 1966171168
        %v450 = vunpack.c.0.s8 %v449
        %v451 = vlaneseq
        %v452 = vshrl.u32 %v451, 7
        %v453 = vsub.s32 %v450, %v452
        %v454 = vrot.slane %v447, %v453
        %s456 = scalar_lea.vmem %s120, 3 [#allocation5]
        %457 = vst.msk [vmem:[%s456] ss:$4 sm:$0x3] %vm388, %v454
        %s458 = sand.u32 %s59, 1
        %s459 = scalar_lea.sflag [#allocation3], %s458
        %s460 = sand.u32 %s59, 1
        %s461 = smul.addr %s460, 8
        %s462 = scalar_lea.vmem [#allocation5], %s461
        // Predicated region
        $region29: #{tpu_custom_call.1} parent=23 // pred_check
          %p463 = pneg %p69
        $region30: #{tpu_custom_call.1} parent=23 // pred_check_branch
          %465 = sbr.rel (%p463) target = $region32
        $region31: #{tpu_custom_call.1} parent=23 // pred_region
          %s466 = smul.u32 2, %s21
          %s468 = ssub.s32 128, 128
          %469 = vsyncadd %s459, %s468
          %s470 = smul.addr %s20, 2
          %s471 = sadd.s32 %s466, %s470
          %s472 = smul.addr %s471, 64
          %s473 = scalar_lea.hbm %s1, %s472
          %s475 = sshll.u32 %s462, 4
          %s476 = int_to_ptr.vmem [resolvable:$true] %s475
          %478 = dma.vmem_to_hbm [thread:$0]  %s476, 128, %s473, %s459
        $region32: #{tpu_custom_call.1} parent=23 // pred_fallthru
          _
      $region24: #{tpu_custom_call.1} parent=5 // pred_fallthru
        _
      %p479 = scmp.le.s32.totalorder 2, %s11
      // Predicated region
      $region33: #{tpu_custom_call.1} parent=5 // pred_check
        %p480 = pneg %p479
      $region34: #{tpu_custom_call.1} parent=5 // pred_check_branch
        %482 = sbr.rel (%p480) target = $region36
      $region35: #{tpu_custom_call.1} parent=5 // pred_region
        %s483 = ssub.s32 %s11, 2
        // Predicated region
        $region37: #{tpu_custom_call.1} parent=35 // pred_check
          %p484 = pneg %p75
        $region38: #{tpu_custom_call.1} parent=35 // pred_check_branch
          %486 = sbr.rel (%p484) target = $region40
        $region39: #{tpu_custom_call.1} parent=35 // pred_region
          %s487 = sand.u32 %s60, 1
          %s488 = scalar_lea.sflag [#allocation3], %s487
          %s489 = sand.u32 %s60, 1
          %s490 = smul.addr %s489, 8
          %s491 = scalar_lea.vmem [#allocation5], %s490
          %492 = dma.done %s488, 128
        $region40: #{tpu_custom_call.1} parent=35 // pred_fallthru
          _
      $region36: #{tpu_custom_call.1} parent=5 // pred_fallthru
        _
    $region6: #{tpu_custom_call.1} parent=1 // loop_footer
      %s15 = sadd.s32 1, %s11
    $region7: #{tpu_custom_call.1} parent=1 // loop_footer_branch
      %10 = sbr.rel target = $region3
    $region8: #{tpu_custom_call.1} parent=1 // loop_exit
      _
    %493 = vsyncpa [#allocation3], 1
    %s494 = scalar_lea.sflag [#allocation3], 1
    %495 = vsyncpa %s494, 1
    %496 = vsyncpa [#allocation4], 1
    %s497 = scalar_lea.sflag [#allocation4], 1
    %498 = vsyncpa %s497, 1

</llo_original>
